<compile_context>
chip_gen: v7x
topology: tpu7x:2x2x1
jax: 0.10.0
libtpu: 0.0.40
codegen_flags: <defaults>
</compile_context>

<pallas_src>
import functools

import jax
import jax.numpy as jnp
import numpy as np
from jax import lax
from jax.experimental import pallas as pl
from jax.experimental.pallas import tpu as pltpu

MIN_NORM = 1e-15        # PoincareBall.min_norm
EPS_F32 = 4e-3          # PoincareBall.eps[torch.float32]
ARTANH_CLAMP = 1e-7     # f32-representable artanh clamp


def _round_up(a, b):
    return int(pl.cdiv(a, b) * b)


# ----------------------------------------------------------------------------
# Fused kernel. Grid = (M tiles over output rows [parallel],
#                       K tiles over the contraction [arbitrary]).
# Per step: logmap0 on the K-slab of x (cheap, O(1/TM) of the matmul cost when
# recomputed per M tile), MXU matmul accumulate, finalize expmap0+proj on last K.
# ----------------------------------------------------------------------------
def hyp_agg_kernel(adj_ref, x_ref, o_ref, acc_ref, *, c, mm_dtype):
    sqrt_c = c ** 0.5
    inv_sqrt_c = 1.0 / sqrt_c
    k = pl.program_id(1)

    @pl.when(k == 0)
    def _init():
        acc_ref[...] = jnp.zeros_like(acc_ref)

    # ---- logmap0 on this K-slab of x (per-row scale, no full-tile divides) ----
    x = x_ref[...].astype(jnp.float32)                                   # (TK, D)
    sumsq = jnp.maximum(jnp.sum(x * x, axis=-1, keepdims=True), MIN_NORM * MIN_NORM)
    rnorm = lax.rsqrt(sumsq)                                             # 1/||x||
    norm = sumsq * rnorm                                                 # ||x||
    a = jnp.minimum(sqrt_c * norm, 1.0 - ARTANH_CLAMP)
    artanh = 0.5 * jnp.log((1.0 + a) / (1.0 - a))
    x_t = ((artanh * inv_sqrt_c) * rnorm) * x                            # logmap0(x)

    # ---- support_t accumulation on the MXU (bf16 operands, f32 accumulate) ----
    acc_ref[...] += jnp.dot(adj_ref[...].astype(mm_dtype), x_t.astype(mm_dtype),
                            preferred_element_type=jnp.float32)

    # ---- finalize: proj(expmap0(support_t, c), c) ----
    @pl.when(k == pl.num_programs(1) - 1)
    def _finalize():
        u = acc_ref[...]                                                 # (TM, D) f32
        ss = jnp.maximum(jnp.sum(u * u, axis=-1, keepdims=True), MIN_NORM * MIN_NORM)
        ru = lax.rsqrt(ss)
        nu = ss * ru                                                     # ||u||
        t = jnp.tanh(sqrt_c * nu)
        g_scale = (t * inv_sqrt_c) * ru                                  # expmap0 row scale
        g_norm = t * inv_sqrt_c                                          # ||expmap0(u)|| (analytic)
        maxn = (1.0 - EPS_F32) * inv_sqrt_c
        factor = jnp.where(g_norm > maxn, maxn / g_norm, 1.0)            # proj row scale
        o_ref[...] = ((g_scale * factor) * u).astype(o_ref.dtype)


# ----------------------------------------------------------------------------
# Wrapper: padding to tile/lane boundaries, BlockSpecs, VMEM budget.
# ----------------------------------------------------------------------------
def hyp_agg(x, adj, c, *, tm=256, tk=256, matmul_dtype=jnp.bfloat16):
    n, d = x.shape
    assert adj.shape == (n, n)
    c = float(c)

    # Shrink tiles for small problems; M stays a sublane-friendly multiple of 16+,
    # K and D stay lane-dense multiples of 128.
    tm = min(int(tm), _round_up(n, 128))
    tk = min(int(tk), _round_up(n, 128))
    d_pad = _round_up(d, 128)
    n_pad_m = _round_up(n, tm)
    n_pad_k = _round_up(n, tk)

    # x kept f32 in HBM (logmap0 precision); adj shipped in the matmul dtype
    # (halves the dominant (N,N) DMA when bf16). Zero padding is inert: padded x rows
    # give a zero tangent vector, padded adj rows/cols contribute nothing.
    x_p = jnp.pad(x.astype(jnp.float32), ((0, n_pad_k - n), (0, d_pad - d)))
    adj_p = jnp.pad(adj.astype(matmul_dtype), ((0, n_pad_m - n), (0, n_pad_k - n)))

    # VMEM budget: double-buffered adj / x / out tiles + f32 accumulator (+ slack).
    out_itemsize = jnp.dtype(x.dtype).itemsize
    vmem_est = (2 * tm * tk * adj_p.dtype.itemsize
                + 2 * tk * d_pad * x_p.dtype.itemsize
                + 2 * tm * d_pad * out_itemsize
                + tm * d_pad * 4)
    vmem_limit = int(min(64 * 2**20, max(2 * vmem_est + (4 << 20), 32 * 2**20)))

    kernel = functools.partial(hyp_agg_kernel, c=c, mm_dtype=matmul_dtype)
    out = pl.pallas_call(
        kernel,
        out_shape=jax.ShapeDtypeStruct((n_pad_m, d_pad), x.dtype),
        grid_spec=pltpu.PrefetchScalarGridSpec(
            num_scalar_prefetch=0,
            grid=(n_pad_m // tm, n_pad_k // tk),
            in_specs=[
                pl.BlockSpec((tm, tk), lambda i, k: (i, k)),        # adj tile
                pl.BlockSpec((tk, d_pad), lambda i, k: (k, 0)),     # x K-slab (full D)
            ],
            out_specs=pl.BlockSpec((tm, d_pad), lambda i, k: (i, 0)),
            scratch_shapes=[pltpu.VMEM((tm, d_pad), jnp.float32)],
        ),
        compiler_params=pltpu.CompilerParams(
            dimension_semantics=("parallel", "arbitrary"),
            vmem_limit_bytes=vmem_limit,
        ),
    )(adj_p, x_p)
    return out[:n, :d]


# ----------------------------------------------------------------------------
# Pure-JAX reference (same math; matmul operands cast to the same dtype).
# ----------------------------------------------------------------------------
def hyp_agg_ref(x, adj, c, matmul_dtype=jnp.bfloat16):
    c = float(c)
    sqrt_c = c ** 0.5
    x = x.astype(jnp.float32)

    xn = jnp.maximum(jnp.linalg.norm(x, axis=-1, keepdims=True), MIN_NORM)
    a = jnp.minimum(sqrt_c * xn, 1.0 - ARTANH_CLAMP)
    artanh = 0.5 * jnp.log((1.0 + a) / (1.0 - a))
    x_t = (1.0 / sqrt_c) * artanh / xn * x                         # logmap0

    support = jnp.dot(adj.astype(matmul_dtype), x_t.astype(matmul_dtype),
                      preferred_element_type=jnp.float32)          # spmm (dense)

    un = jnp.maximum(jnp.linalg.norm(support, axis=-1, keepdims=True), MIN_NORM)
    gamma = jnp.tanh(sqrt_c * un) * support / (sqrt_c * un)        # expmap0
    gn = jnp.maximum(jnp.linalg.norm(gamma, axis=-1, keepdims=True), MIN_NORM)
    maxn = (1.0 - EPS_F32) / sqrt_c
    return jnp.where(gn > maxn, gamma / gn * maxn, gamma)          # proj


if __name__ == "__main__":
    key = jax.random.PRNGKey(0)
    c = 1.0

    def make_inputs(k, n, d, scale):
        kx, ka = jax.random.split(k)
        x = (scale * jax.random.normal(kx, (n, d))).astype(jnp.float32)  # inside the ball
        a = (jax.random.uniform(ka, (n, n)) < 0.3).astype(jnp.float32)
        a = jnp.maximum(a, a.T) + jnp.eye(n, dtype=jnp.float32)          # symmetric + self loops
        adj = a / jnp.sum(a, axis=1, keepdims=True)                      # row-normalized
        return x, adj

    k1, k2 = jax.random.split(key)

    # Case 1: small shapes, single grid step.
    x1, adj1 = make_inputs(k1, 16, 64, 0.05)
    out1 = jax.block_until_ready(hyp_agg(x1, adj1, c))
    ref1 = jax.block_until_ready(hyp_agg_ref(x1, adj1, c))
    np.testing.assert_allclose(np.asarray(out1), np.asarray(ref1), atol=2e-4, rtol=2e-3)

    # Case 2: non-multiple sizes with small tiles -> exercises padding + K accumulation.
    x2, adj2 = make_inputs(k2, 200, 80, 0.04)
    out2 = jax.block_until_ready(hyp_agg(x2, adj2, c, tm=128, tk=128))
    ref2 = jax.block_until_ready(hyp_agg_ref(x2, adj2, c))
    np.testing.assert_allclose(np.asarray(out2), np.asarray(ref2), atol=2e-4, rtol=2e-3)

    print("KERNEL_OK")
</pallas_src>

<mosaic_0001>
module attributes {stable_mosaic.version = 11 : i64} {
  func.func @hyp_agg_kernel(%arg0: i32, %arg1: i32, %arg2: memref<128x128xbf16, #tpu.memory_space<vmem>>, %arg3: memref<128x128xf32, #tpu.memory_space<vmem>>, %arg4: memref<128x128xf32, #tpu.memory_space<vmem>>, %arg5: memref<128x128xf32, #tpu.memory_space<vmem>>) attributes {dimension_semantics = [#tpu.dimension_semantics<parallel>, #tpu.dimension_semantics<arbitrary>], iteration_bounds = array<i64: 1, 1>, scalar_prefetch = 0 : i64, scratch_operands = 1 : i64, tpu.core_type = #tpu.core_type<tc>, window_params = [{transform_indices = @transform_0, window_bounds = array<i64: 128, 128>}, {transform_indices = @transform_1, window_bounds = array<i64: 128, 128>}, {transform_indices = @transform_2, window_bounds = array<i64: 128, 128>}]} {
    %c0_i32 = arith.constant 0 : i32
    %0 = arith.cmpi eq, %arg1, %c0_i32 : i32
    %1 = arith.extui %0 : i1 to i32
    %c0_i32_0 = arith.constant 0 : i32
    %2 = arith.cmpi ne, %1, %c0_i32_0 : i32
    scf.if %2 {
      %cst_18 = arith.constant 0.000000e+00 : f32
      %37 = vector.broadcast %cst_18 : f32 to vector<128x128xf32>
      %c0_19 = arith.constant 0 : index
      %c0_20 = arith.constant 0 : index
      %38 = vector.load %arg5[%c0_19, %c0_20] : memref<128x128xf32, #tpu.memory_space<vmem>>, vector<128x128xf32>
      tpu.vector_store %arg5[%c0_19, %c0_20], %37 {strides = array<i32>} : memref<128x128xf32, #tpu.memory_space<vmem>>, vector<128x128xf32>,
    } else {
    }
    %c0 = arith.constant 0 : index
    %c0_1 = arith.constant 0 : index
    %3 = vector.load %arg3[%c0, %c0_1] : memref<128x128xf32, #tpu.memory_space<vmem>>, vector<128x128xf32>
    %4 = arith.mulf %3, %3 : vector<128x128xf32>
    %cst = arith.constant dense<0.000000e+00> : vector<128xf32>
    %5 = vector.multi_reduction <add>, %4, %cst [1] : vector<128x128xf32> to vector<128xf32>
    %6 = vector.shape_cast %5 : vector<128xf32> to vector<128x1xf32>
    %cst_2 = arith.constant 1.000000e-30 : f32
    %7 = vector.broadcast %cst_2 : f32 to vector<128x1xf32>
    %8 = arith.maximumf %6, %7 : vector<128x1xf32>
    %9 = math.rsqrt %8 : vector<128x1xf32>
    %10 = arith.mulf %8, %9 : vector<128x1xf32>
    %cst_3 = arith.constant 1.000000e+00 : f32
    %11 = vector.broadcast %cst_3 : f32 to vector<128x1xf32>
    %12 = arith.mulf %11, %10 : vector<128x1xf32>
    %cst_4 = arith.constant 0.99999988 : f32
    %13 = vector.broadcast %cst_4 : f32 to vector<128x1xf32>
    %14 = arith.minimumf %12, %13 : vector<128x1xf32>
    %cst_5 = arith.constant 1.000000e+00 : f32
    %15 = vector.broadcast %cst_5 : f32 to vector<128x1xf32>
    %16 = arith.addf %15, %14 : vector<128x1xf32>
    %cst_6 = arith.constant 1.000000e+00 : f32
    %17 = vector.broadcast %cst_6 : f32 to vector<128x1xf32>
    %18 = arith.subf %17, %14 : vector<128x1xf32>
    %19 = arith.divf %16, %18 : vector<128x1xf32>
    %20 = math.log %19 : vector<128x1xf32>
    %cst_7 = arith.constant 5.000000e-01 : f32
    %21 = vector.broadcast %cst_7 : f32 to vector<128x1xf32>
    %22 = arith.mulf %21, %20 : vector<128x1xf32>
    %cst_8 = arith.constant 1.000000e+00 : f32
    %23 = vector.broadcast %cst_8 : f32 to vector<128x1xf32>
    %24 = arith.mulf %22, %23 : vector<128x1xf32>
    %25 = arith.mulf %24, %9 : vector<128x1xf32>
    %26 = vector.broadcast %25 : vector<128x1xf32> to vector<128x128xf32>
    %27 = arith.mulf %26, %3 : vector<128x128xf32>
    %c0_9 = arith.constant 0 : index
    %c0_10 = arith.constant 0 : index
    %28 = vector.load %arg5[%c0_9, %c0_10] : memref<128x128xf32, #tpu.memory_space<vmem>>, vector<128x128xf32>
    %c0_11 = arith.constant 0 : index
    %c0_12 = arith.constant 0 : index
    %29 = vector.load %arg2[%c0_11, %c0_12] : memref<128x128xbf16, #tpu.memory_space<vmem>>, vector<128x128xbf16>
    %30 = arith.truncf %27 : vector<128x128xf32> to vector<128x128xbf16>
    %cst_13 = arith.constant dense<0.000000e+00> : vector<128x128xf32>
    %31 = tpu.matmul %29, %30, %cst_13 {dimension_numbers = #tpu.dot_dimension_numbers<[1], [0], [0], [1], [0, 0, 1, 1], [], []>} : vector<128x128xbf16>, vector<128x128xbf16>, vector<128x128xf32> -> vector<128x128xf32>
    %32 = arith.addf %28, %31 : vector<128x128xf32>
    %c0_14 = arith.constant 0 : index
    %c0_15 = arith.constant 0 : index
    %33 = vector.load %arg5[%c0_14, %c0_15] : memref<128x128xf32, #tpu.memory_space<vmem>>, vector<128x128xf32>
    tpu.vector_store %arg5[%c0_14, %c0_15], %32 {strides = array<i32>} : memref<128x128xf32, #tpu.memory_space<vmem>>, vector<128x128xf32>,
    %c0_i32_16 = arith.constant 0 : i32
    %34 = arith.cmpi eq, %arg1, %c0_i32_16 : i32
    %35 = arith.extui %34 : i1 to i32
    %c0_i32_17 = arith.constant 0 : i32
    %36 = arith.cmpi ne, %35, %c0_i32_17 : i32
    scf.if %36 {
      %c0_18 = arith.constant 0 : index
      %c0_19 = arith.constant 0 : index
      %37 = vector.load %arg5[%c0_18, %c0_19] : memref<128x128xf32, #tpu.memory_space<vmem>>, vector<128x128xf32>
      %38 = arith.mulf %37, %37 : vector<128x128xf32>
      %cst_20 = arith.constant dense<0.000000e+00> : vector<128xf32>
      %39 = vector.multi_reduction <add>, %38, %cst_20 [1] : vector<128x128xf32> to vector<128xf32>
      %40 = vector.shape_cast %39 : vector<128xf32> to vector<128x1xf32>
      %cst_21 = arith.constant 1.000000e-30 : f32
      %41 = vector.broadcast %cst_21 : f32 to vector<128x1xf32>
      %42 = arith.maximumf %40, %41 : vector<128x1xf32>
      %43 = math.rsqrt %42 : vector<128x1xf32>
      %44 = arith.mulf %42, %43 : vector<128x1xf32>
      %cst_22 = arith.constant 1.000000e+00 : f32
      %45 = vector.broadcast %cst_22 : f32 to vector<128x1xf32>
      %46 = arith.mulf %45, %44 : vector<128x1xf32>
      %47 = math.tanh %46 : vector<128x1xf32>
      %cst_23 = arith.constant 1.000000e+00 : f32
      %48 = vector.broadcast %cst_23 : f32 to vector<128x1xf32>
      %49 = arith.mulf %47, %48 : vector<128x1xf32>
      %50 = arith.mulf %49, %43 : vector<128x1xf32>
      %cst_24 = arith.constant 1.000000e+00 : f32
      %51 = vector.broadcast %cst_24 : f32 to vector<128x1xf32>
      %52 = arith.mulf %47, %51 : vector<128x1xf32>
      %cst_25 = arith.constant 0.995999991 : f32
      %53 = vector.broadcast %cst_25 : f32 to vector<128x1xf32>
      %54 = arith.cmpf ogt, %52, %53 : vector<128x1xf32>
      %cst_26 = arith.constant 0.995999991 : f32
      %55 = vector.broadcast %cst_26 : f32 to vector<128x1xf32>
      %56 = arith.divf %55, %52 : vector<128x1xf32>
      %cst_27 = arith.constant 1.000000e+00 : f32
      %57 = vector.broadcast %cst_27 : f32 to vector<128x1xf32>
      %58 = arith.select %54, %56, %57 : vector<128x1xi1>, vector<128x1xf32>
      %59 = arith.mulf %50, %58 : vector<128x1xf32>
      %60 = vector.broadcast %59 : vector<128x1xf32> to vector<128x128xf32>
      %61 = arith.mulf %60, %37 : vector<128x128xf32>
      %c0_28 = arith.constant 0 : index
      %c0_29 = arith.constant 0 : index
      %62 = vector.load %arg4[%c0_28, %c0_29] : memref<128x128xf32, #tpu.memory_space<vmem>>, vector<128x128xf32>
      tpu.vector_store %arg4[%c0_28, %c0_29], %61 {strides = array<i32>} : memref<128x128xf32, #tpu.memory_space<vmem>>, vector<128x128xf32>,
    } else {
    }
    return
  }
  func.func @transform_0(%arg0: i32, %arg1: i32) -> (i32, i32) {
    %c0_i32 = arith.constant 0 : i32
    return %arg0, %arg1 : i32, i32
  }
  func.func @transform_1(%arg0: i32, %arg1: i32) -> (i32, i32) {
    %c0_i32 = arith.constant 0 : i32
    %c0_i32_0 = arith.constant 0 : i32
    return %arg1, %c0_i32 : i32, i32
  }
  func.func @transform_2(%arg0: i32, %arg1: i32) -> (i32, i32) {
    %c0_i32 = arith.constant 0 : i32
    %c0_i32_0 = arith.constant 0 : i32
    return %arg0, %c0_i32 : i32, i32
  }
}

</mosaic_0001>

<llo_original>
// kernel: tpu_custom_call.1
$region0: #{tpu_custom_call.1}
  #allocation0 [shape = 'u32[]', space=smem, size = 0x4, offset = 0x4, fixed_abs, tag = 'smem constant byte address 0x4 - core index']
  #allocation1 [shape = 'u32[144,128]{1,0:T(1,128)}', space=vmem, size = 0x12000, scoped, tag = 'internal scratch']
  #allocation2 [shape = 'f32[128,128]{1,0:T(8,128)}', space=vmem, size = 0x10000, scoped, tag = 'scratch operand']
  %s0 = inlined_call_operand.hbm [shape: bf16[128,128], index: 0, kind: input, shape index: {}]
  %s1 = inlined_call_operand.hbm [shape: f32[128,128], index: 1, kind: input, shape index: {}]
  %s2 = inlined_call_operand.hbm [shape: f32[128,128], index: 2, kind: output, shape index: {}]
  %s3 = sld [smem:[#allocation0]]
  $region34: #{tpu_custom_call.1} parent=0
    _
  %s5 = ssub.s32 1, %s3
  %s6 = scalar_select 0, %s5, %s3
  $region1: #{tpu_custom_call.1} parent=0
    #allocation3 [shape = 'u8[32768]{0}', space=vmem, size = 0x8000, scoped, tag = 'input window, operand 0, single buffered']
    #allocation4 [shape = 's32[1]{0}', space=sflag, size = 0x4, scoped, tag = 'scoped memory for tpu_custom_call.1']
    #allocation5 [shape = 's32[1]{0}', space=sflag, size = 0x4, scoped, tag = 'scoped memory for tpu_custom_call.1']
    #allocation6 [shape = 'u8[65536]{0}', space=vmem, size = 0x10000, scoped, tag = 'input window, operand 1, single buffered']
    #allocation7 [shape = 's32[1]{0}', space=sflag, size = 0x4, scoped, tag = 'scoped memory for tpu_custom_call.1']
    #allocation8 [shape = 'u8[65536]{0}', space=vmem, size = 0x10000, scoped, tag = 'output window, operand 0, single buffered']
    %7 = vsyncpa [#allocation4], 0
    %8 = vsyncpa [#allocation7], 0
    %9 = vsyncpa [#allocation5], 0
    // Predicated region
    $region2: #{tpu_custom_call.1} parent=1 // pred_check
      _
    $region3: #{tpu_custom_call.1} parent=1 // pred_check_branch
      %11 = sbr.rel (0) target = $region5
    $region4: #{tpu_custom_call.1} parent=1 // pred_region
      %s13 = ssub.s32 1024, 1024
      %14 = vsyncadd [#allocation4], %s13
      %s15 = sshll.u32 [#allocation3], 4
      %s16 = int_to_ptr.vmem [resolvable:$true] %s15
      %21 = dma.hbm_to_vmem [thread:$0]  %s0, 1024, %s16, [#allocation4], 64, 64, 4
    $region5: #{tpu_custom_call.1} parent=1 // pred_fallthru
      _
    // Predicated region
    $region6: #{tpu_custom_call.1} parent=1 // pred_check
      _
    $region7: #{tpu_custom_call.1} parent=1 // pred_check_branch
      %23 = sbr.rel (0) target = $region9
    $region8: #{tpu_custom_call.1} parent=1 // pred_region
      %s25 = ssub.s32 2048, 2048
      %26 = vsyncadd [#allocation7], %s25
      %s27 = sshll.u32 [#allocation6], 4
      %s28 = int_to_ptr.vmem [resolvable:$true] %s27
      %33 = dma.hbm_to_vmem [thread:$0]  %s1, 2048, %s28, [#allocation7], 128, 128, 8
    $region9: #{tpu_custom_call.1} parent=1 // pred_fallthru
      _
    // Predicated region
    $region10: #{tpu_custom_call.1} parent=1 // pred_check
      _
    $region11: #{tpu_custom_call.1} parent=1 // pred_check_branch
      %35 = sbr.rel (0) target = $region13
    $region12: #{tpu_custom_call.1} parent=1 // pred_region
      %36 = dma.done [#allocation4], 1024
    $region13: #{tpu_custom_call.1} parent=1 // pred_fallthru
      _
    // Predicated region
    $region14: #{tpu_custom_call.1} parent=1 // pred_check
      _
    $region15: #{tpu_custom_call.1} parent=1 // pred_check_branch
      %38 = sbr.rel (0) target = $region17
    $region16: #{tpu_custom_call.1} parent=1 // pred_region
      %39 = dma.done [#allocation7], 2048
    $region17: #{tpu_custom_call.1} parent=1 // pred_fallthru
      _
    %p41 = scmp.eq.s32.totalorder 0, 0
    // Predicated region
    $region18: #{tpu_custom_call.1} parent=1 // pred_check
      %p42 = pneg %p41
    $region19: #{tpu_custom_call.1} parent=1 // pred_check_branch
      %44 = sbr.rel (%p42) target = $region21
    $region20: #{tpu_custom_call.1} parent=1 // pred_region
      %45 = vst [vmem:[#allocation2] sm:$0xff] 0.0
      %46 = vst [vmem:[#allocation2 + $0x8] sm:$0xff] 0.0
      %47 = vst [vmem:[#allocation2 + $0x10] sm:$0xff] 0.0
      %48 = vst [vmem:[#allocation2 + $0x18] sm:$0xff] 0.0
      %49 = vst [vmem:[#allocation2 + $0x20] sm:$0xff] 0.0
      %50 = vst [vmem:[#allocation2 + $0x28] sm:$0xff] 0.0
      %51 = vst [vmem:[#allocation2 + $0x30] sm:$0xff] 0.0
      %52 = vst [vmem:[#allocation2 + $0x38] sm:$0xff] 0.0
      %53 = vst [vmem:[#allocation2 + $0x40] sm:$0xff] 0.0
      %54 = vst [vmem:[#allocation2 + $0x48] sm:$0xff] 0.0
      %55 = vst [vmem:[#allocation2 + $0x50] sm:$0xff] 0.0
      %56 = vst [vmem:[#allocation2 + $0x58] sm:$0xff] 0.0
      %57 = vst [vmem:[#allocation2 + $0x60] sm:$0xff] 0.0
      %58 = vst [vmem:[#allocation2 + $0x68] sm:$0xff] 0.0
      %59 = vst [vmem:[#allocation2 + $0x70] sm:$0xff] 0.0
      %60 = vst [vmem:[#allocation2 + $0x78] sm:$0xff] 0.0
    $region21: #{tpu_custom_call.1} parent=1 // pred_fallthru
      _
    %v61 = vld [vmem:[#allocation6] sm:$0xff]
    %v62 = vld [vmem:[#allocation6 + $0x8] sm:$0xff]
    %v63 = vld [vmem:[#allocation6 + $0x10] sm:$0xff]
    %v64 = vld [vmem:[#allocation6 + $0x18] sm:$0xff]
    %v65 = vld [vmem:[#allocation6 + $0x20] sm:$0xff]
    %v66 = vld [vmem:[#allocation6 + $0x28] sm:$0xff]
    %v67 = vld [vmem:[#allocation6 + $0x30] sm:$0xff]
    %v68 = vld [vmem:[#allocation6 + $0x38] sm:$0xff]
    %v69 = vld [vmem:[#allocation6 + $0x40] sm:$0xff]
    %v70 = vld [vmem:[#allocation6 + $0x48] sm:$0xff]
    %v71 = vld [vmem:[#allocation6 + $0x50] sm:$0xff]
    %v72 = vld [vmem:[#allocation6 + $0x58] sm:$0xff]
    %v73 = vld [vmem:[#allocation6 + $0x60] sm:$0xff]
    %v74 = vld [vmem:[#allocation6 + $0x68] sm:$0xff]
    %v75 = vld [vmem:[#allocation6 + $0x70] sm:$0xff]
    %v76 = vld [vmem:[#allocation6 + $0x78] sm:$0xff]
    %v77 = vmul.f32 %v61, %v61
    %v78 = vmul.f32 %v62, %v62
    %v79 = vmul.f32 %v63, %v63
    %v80 = vmul.f32 %v64, %v64
    %v81 = vmul.f32 %v65, %v65
    %v82 = vmul.f32 %v66, %v66
    %v83 = vmul.f32 %v67, %v67
    %v84 = vmul.f32 %v68, %v68
    %v85 = vmul.f32 %v69, %v69
    %v86 = vmul.f32 %v70, %v70
    %v87 = vmul.f32 %v71, %v71
    %v88 = vmul.f32 %v72, %v72
    %v89 = vmul.f32 %v73, %v73
    %v90 = vmul.f32 %v74, %v74
    %v91 = vmul.f32 %v75, %v75
    %v92 = vmul.f32 %v76, %v76
    %93 = vadd.xlane.f32.xlu0 %v77
    %v94 = vpop.xlane.xlu0 %93
    %95 = vadd.xlane.f32.xlu0 %v78
    %v96 = vpop.xlane.xlu0 %95
    %97 = vadd.xlane.f32.xlu0 %v79
    %v98 = vpop.xlane.xlu0 %97
    %99 = vadd.xlane.f32.xlu0 %v80
    %v100 = vpop.xlane.xlu0 %99
    %101 = vadd.xlane.f32.xlu0 %v81
    %v102 = vpop.xlane.xlu0 %101
    %103 = vadd.xlane.f32.xlu0 %v82
    %v104 = vpop.xlane.xlu0 %103
    %105 = vadd.xlane.f32.xlu0 %v83
    %v106 = vpop.xlane.xlu0 %105
    %107 = vadd.xlane.f32.xlu0 %v84
    %v108 = vpop.xlane.xlu0 %107
    %109 = vadd.xlane.f32.xlu0 %v85
    %v110 = vpop.xlane.xlu0 %109
    %111 = vadd.xlane.f32.xlu0 %v86
    %v112 = vpop.xlane.xlu0 %111
    %113 = vadd.xlane.f32.xlu0 %v87
    %v114 = vpop.xlane.xlu0 %113
    %115 = vadd.xlane.f32.xlu0 %v88
    %v116 = vpop.xlane.xlu0 %115
    %117 = vadd.xlane.f32.xlu0 %v89
    %v118 = vpop.xlane.xlu0 %117
    %119 = vadd.xlane.f32.xlu0 %v90
    %v120 = vpop.xlane.xlu0 %119
    %121 = vadd.xlane.f32.xlu0 %v91
    %v122 = vpop.xlane.xlu0 %121
    %123 = vadd.xlane.f32.xlu0 %v92
    %v124 = vpop.xlane.xlu0 %123
    %v125 = vmax.f32 %v94, 1e-30
    %v126 = vmax.f32 %v96, 1e-30
    %v127 = vmax.f32 %v98, 1e-30
    %v128 = vmax.f32 %v100, 1e-30
    %v129 = vmax.f32 %v102, 1e-30
    %v130 = vmax.f32 %v104, 1e-30
    %v131 = vmax.f32 %v106, 1e-30
    %v132 = vmax.f32 %v108, 1e-30
    %v133 = vmax.f32 %v110, 1e-30
    %v134 = vmax.f32 %v112, 1e-30
    %v135 = vmax.f32 %v114, 1e-30
    %v136 = vmax.f32 %v116, 1e-30
    %v137 = vmax.f32 %v118, 1e-30
    %v138 = vmax.f32 %v120, 1e-30
    %v139 = vmax.f32 %v122, 1e-30
    %v140 = vmax.f32 %v124, 1e-30
    %v141 = vrsqrt.pop %v125
    %v142 = vrsqrt.pop %v126
    %v143 = vrsqrt.pop %v127
    %v144 = vrsqrt.pop %v128
    %v145 = vrsqrt.pop %v129
    %v146 = vrsqrt.pop %v130
    %v147 = vrsqrt.pop %v131
    %v148 = vrsqrt.pop %v132
    %v149 = vrsqrt.pop %v133
    %v150 = vrsqrt.pop %v134
    %v151 = vrsqrt.pop %v135
    %v152 = vrsqrt.pop %v136
    %v153 = vrsqrt.pop %v137
    %v154 = vrsqrt.pop %v138
    %v155 = vrsqrt.pop %v139
    %v156 = vrsqrt.pop %v140
    %v157 = vmul.f32 %v125, %v141
    %v158 = vmul.f32 %v126, %v142
    %v159 = vmul.f32 %v127, %v143
    %v160 = vmul.f32 %v128, %v144
    %v161 = vmul.f32 %v129, %v145
    %v162 = vmul.f32 %v130, %v146
    %v163 = vmul.f32 %v131, %v147
    %v164 = vmul.f32 %v132, %v148
    %v165 = vmul.f32 %v133, %v149
    %v166 = vmul.f32 %v134, %v150
    %v167 = vmul.f32 %v135, %v151
    %v168 = vmul.f32 %v136, %v152
    %v169 = vmul.f32 %v137, %v153
    %v170 = vmul.f32 %v138, %v154
    %v171 = vmul.f32 %v139, %v155
    %v172 = vmul.f32 %v140, %v156
    %v173 = vmin.f32 %v157, 0.9999999
    %v174 = vmin.f32 %v158, 0.9999999
    %v175 = vmin.f32 %v159, 0.9999999
    %v176 = vmin.f32 %v160, 0.9999999
    %v177 = vmin.f32 %v161, 0.9999999
    %v178 = vmin.f32 %v162, 0.9999999
    %v179 = vmin.f32 %v163, 0.9999999
    %v180 = vmin.f32 %v164, 0.9999999
    %v181 = vmin.f32 %v165, 0.9999999
    %v182 = vmin.f32 %v166, 0.9999999
    %v183 = vmin.f32 %v167, 0.9999999
    %v184 = vmin.f32 %v168, 0.9999999
    %v185 = vmin.f32 %v169, 0.9999999
    %v186 = vmin.f32 %v170, 0.9999999
    %v187 = vmin.f32 %v171, 0.9999999
    %v188 = vmin.f32 %v172, 0.9999999
    %v189 = vadd.f32 %v173, 1.0
    %v190 = vadd.f32 %v174, 1.0
    %v191 = vadd.f32 %v175, 1.0
    %v192 = vadd.f32 %v176, 1.0
    %v193 = vadd.f32 %v177, 1.0
    %v194 = vadd.f32 %v178, 1.0
    %v195 = vadd.f32 %v179, 1.0
    %v196 = vadd.f32 %v180, 1.0
    %v197 = vadd.f32 %v181, 1.0
    %v198 = vadd.f32 %v182, 1.0
    %v199 = vadd.f32 %v183, 1.0
    %v200 = vadd.f32 %v184, 1.0
    %v201 = vadd.f32 %v185, 1.0
    %v202 = vadd.f32 %v186, 1.0
    %v203 = vadd.f32 %v187, 1.0
    %v204 = vadd.f32 %v188, 1.0
    %v205 = vsub.f32 1.0, %v173
    %v206 = vsub.f32 1.0, %v174
    %v207 = vsub.f32 1.0, %v175
    %v208 = vsub.f32 1.0, %v176
    %v209 = vsub.f32 1.0, %v177
    %v210 = vsub.f32 1.0, %v178
    %v211 = vsub.f32 1.0, %v179
    %v212 = vsub.f32 1.0, %v180
    %v213 = vsub.f32 1.0, %v181
    %v214 = vsub.f32 1.0, %v182
    %v215 = vsub.f32 1.0, %v183
    %v216 = vsub.f32 1.0, %v184
    %v217 = vsub.f32 1.0, %v185
    %v218 = vsub.f32 1.0, %v186
    %v219 = vsub.f32 1.0, %v187
    %v220 = vsub.f32 1.0, %v188
    %v221 = vrcp.pop %v205
    %v222 = vmul.f32 %v189, %v221
    %v223 = vrcp.pop %v206
    %v224 = vmul.f32 %v190, %v223
    %v225 = vrcp.pop %v207
    %v226 = vmul.f32 %v191, %v225
    %v227 = vrcp.pop %v208
    %v228 = vmul.f32 %v192, %v227
    %v229 = vrcp.pop %v209
    %v230 = vmul.f32 %v193, %v229
    %v231 = vrcp.pop %v210
    %v232 = vmul.f32 %v194, %v231
    %v233 = vrcp.pop %v211
    %v234 = vmul.f32 %v195, %v233
    %v235 = vrcp.pop %v212
    %v236 = vmul.f32 %v196, %v235
    %v237 = vrcp.pop %v213
    %v238 = vmul.f32 %v197, %v237
    %v239 = vrcp.pop %v214
    %v240 = vmul.f32 %v198, %v239
    %v241 = vrcp.pop %v215
    %v242 = vmul.f32 %v199, %v241
    %v243 = vrcp.pop %v216
    %v244 = vmul.f32 %v200, %v243
    %v245 = vrcp.pop %v217
    %v246 = vmul.f32 %v201, %v245
    %v247 = vrcp.pop %v218
    %v248 = vmul.f32 %v202, %v247
    %v249 = vrcp.pop %v219
    %v250 = vmul.f32 %v203, %v249
    %v251 = vrcp.pop %v220
    %v252 = vmul.f32 %v204, %v251
    %v253 = vlog2.pop %v222
    %v254 = vmul.f32 %v253, 0.6931472
    %v255 = vlog2.pop %v224
    %v256 = vmul.f32 %v255, 0.6931472
    %v257 = vlog2.pop %v226
    %v258 = vmul.f32 %v257, 0.6931472
    %v259 = vlog2.pop %v228
    %v260 = vmul.f32 %v259, 0.6931472
    %v261 = vlog2.pop %v230
    %v262 = vmul.f32 %v261, 0.6931472
    %v263 = vlog2.pop %v232
    %v264 = vmul.f32 %v263, 0.6931472
    %v265 = vlog2.pop %v234
    %v266 = vmul.f32 %v265, 0.6931472
    %v267 = vlog2.pop %v236
    %v268 = vmul.f32 %v267, 0.6931472
    %v269 = vlog2.pop %v238
    %v270 = vmul.f32 %v269, 0.6931472
    %v271 = vlog2.pop %v240
    %v272 = vmul.f32 %v271, 0.6931472
    %v273 = vlog2.pop %v242
    %v274 = vmul.f32 %v273, 0.6931472
    %v275 = vlog2.pop %v244
    %v276 = vmul.f32 %v275, 0.6931472
    %v277 = vlog2.pop %v246
    %v278 = vmul.f32 %v277, 0.6931472
    %v279 = vlog2.pop %v248
    %v280 = vmul.f32 %v279, 0.6931472
    %v281 = vlog2.pop %v250
    %v282 = vmul.f32 %v281, 0.6931472
    %v283 = vlog2.pop %v252
    %v284 = vmul.f32 %v283, 0.6931472
    %v285 = vmul.f32 %v254, 0.5
    %v286 = vmul.f32 %v256, 0.5
    %v287 = vmul.f32 %v258, 0.5
    %v288 = vmul.f32 %v260, 0.5
    %v289 = vmul.f32 %v262, 0.5
    %v290 = vmul.f32 %v264, 0.5
    %v291 = vmul.f32 %v266, 0.5
    %v292 = vmul.f32 %v268, 0.5
    %v293 = vmul.f32 %v270, 0.5
    %v294 = vmul.f32 %v272, 0.5
    %v295 = vmul.f32 %v274, 0.5
    %v296 = vmul.f32 %v276, 0.5
    %v297 = vmul.f32 %v278, 0.5
    %v298 = vmul.f32 %v280, 0.5
    %v299 = vmul.f32 %v282, 0.5
    %v300 = vmul.f32 %v284, 0.5
    %v301 = vmul.f32 %v285, %v141
    %v302 = vmul.f32 %v286, %v142
    %v303 = vmul.f32 %v287, %v143
    %v304 = vmul.f32 %v288, %v144
    %v305 = vmul.f32 %v289, %v145
    %v306 = vmul.f32 %v290, %v146
    %v307 = vmul.f32 %v291, %v147
    %v308 = vmul.f32 %v292, %v148
    %v309 = vmul.f32 %v293, %v149
    %v310 = vmul.f32 %v294, %v150
    %v311 = vmul.f32 %v295, %v151
    %v312 = vmul.f32 %v296, %v152
    %v313 = vmul.f32 %v297, %v153
    %v314 = vmul.f32 %v298, %v154
    %v315 = vmul.f32 %v299, %v155
    %v316 = vmul.f32 %v300, %v156
    %v317 = vmul.f32 %v301, %v61
    %v318 = vmul.f32 %v302, %v62
    %v319 = vmul.f32 %v303, %v63
    %v320 = vmul.f32 %v304, %v64
    %v321 = vmul.f32 %v305, %v65
    %v322 = vmul.f32 %v306, %v66
    %v323 = vmul.f32 %v307, %v67
    %v324 = vmul.f32 %v308, %v68
    %v325 = vmul.f32 %v309, %v69
    %v326 = vmul.f32 %v310, %v70
    %v327 = vmul.f32 %v311, %v71
    %v328 = vmul.f32 %v312, %v72
    %v329 = vmul.f32 %v313, %v73
    %v330 = vmul.f32 %v314, %v74
    %v331 = vmul.f32 %v315, %v75
    %v332 = vmul.f32 %v316, %v76
    %v333 = vld [vmem:[#allocation2] sm:$0xff]
    %v334 = vld [vmem:[#allocation2 + $0x8] sm:$0xff]
    %v335 = vld [vmem:[#allocation2 + $0x10] sm:$0xff]
    %v336 = vld [vmem:[#allocation2 + $0x18] sm:$0xff]
    %v337 = vld [vmem:[#allocation2 + $0x20] sm:$0xff]
    %v338 = vld [vmem:[#allocation2 + $0x28] sm:$0xff]
    %v339 = vld [vmem:[#allocation2 + $0x30] sm:$0xff]
    %v340 = vld [vmem:[#allocation2 + $0x38] sm:$0xff]
    %v341 = vld [vmem:[#allocation2 + $0x40] sm:$0xff]
    %v342 = vld [vmem:[#allocation2 + $0x48] sm:$0xff]
    %v343 = vld [vmem:[#allocation2 + $0x50] sm:$0xff]
    %v344 = vld [vmem:[#allocation2 + $0x58] sm:$0xff]
    %v345 = vld [vmem:[#allocation2 + $0x60] sm:$0xff]
    %v346 = vld [vmem:[#allocation2 + $0x68] sm:$0xff]
    %v347 = vld [vmem:[#allocation2 + $0x70] sm:$0xff]
    %v348 = vld [vmem:[#allocation2 + $0x78] sm:$0xff]
    %v349 = vld [vmem:[#allocation3] sm:$0xf]
    %v350 = vld [vmem:[#allocation3 + $0x4] sm:$0xf]
    %v351 = vld [vmem:[#allocation3 + $0x8] sm:$0xf]
    %v352 = vld [vmem:[#allocation3 + $0xc] sm:$0xf]
    %v353 = vld [vmem:[#allocation3 + $0x10] sm:$0xf]
    %v354 = vld [vmem:[#allocation3 + $0x14] sm:$0xf]
    %v355 = vld [vmem:[#allocation3 + $0x18] sm:$0xf]
    %v356 = vld [vmem:[#allocation3 + $0x1c] sm:$0xf]
    %v357 = vld [vmem:[#allocation3 + $0x20] sm:$0xf]
    %v358 = vld [vmem:[#allocation3 + $0x24] sm:$0xf]
    %v359 = vld [vmem:[#allocation3 + $0x28] sm:$0xf]
    %v360 = vld [vmem:[#allocation3 + $0x2c] sm:$0xf]
    %v361 = vld [vmem:[#allocation3 + $0x30] sm:$0xf]
    %v362 = vld [vmem:[#allocation3 + $0x34] sm:$0xf]
    %v363 = vld [vmem:[#allocation3 + $0x38] sm:$0xf]
    %v364 = vld [vmem:[#allocation3 + $0x3c] sm:$0xf]
    %v365 = vpack.c.bf16 %v318, %v317
    %v366 = vpack.c.bf16 %v320, %v319
    %v367 = vpack.c.bf16 %v322, %v321
    %v368 = vpack.c.bf16 %v324, %v323
    %v369 = vpack.c.bf16 %v326, %v325
    %v370 = vpack.c.bf16 %v328, %v327
    %v371 = vpack.c.bf16 %v330, %v329
    %v372 = vpack.c.bf16 %v332, %v331
    %v389 = vunpack.c.l.b16 %v349
    %v390 = vunpack.c.l.b16 %v350
    %v391 = vunpack.c.l.b16 %v351
    %v392 = vunpack.c.l.b16 %v352
    %v393 = vunpack.c.l.b16 %v353
    %v394 = vunpack.c.l.b16 %v354
    %v395 = vunpack.c.l.b16 %v355
    %v396 = vunpack.c.l.b16 %v356
    %v397 = vunpack.c.l.b16 %v357
    %v398 = vunpack.c.l.b16 %v358
    %v399 = vunpack.c.l.b16 %v359
    %v400 = vunpack.c.l.b16 %v360
    %v401 = vunpack.c.l.b16 %v361
    %v402 = vunpack.c.l.b16 %v362
    %v403 = vunpack.c.l.b16 %v363
    %v404 = vunpack.c.l.b16 %v364
    %v405 = vpack.c.b16 %v390, %v389
    %v406 = vpack.c.b16 %v392, %v391
    %v407 = vpack.c.b16 %v394, %v393
    %v408 = vpack.c.b16 %v396, %v395
    %v409 = vpack.c.b16 %v398, %v397
    %v410 = vpack.c.b16 %v400, %v399
    %v411 = vpack.c.b16 %v402, %v401
    %v412 = vpack.c.b16 %v404, %v403
    %421 = vmatprep.subr.bf16.mxu0 0
    %422 = vmatpush1.bf16.msra.mxu0 %v365
    %423 = vmatprep.subr.bf16.mxu0 0
    %424 = vmatpush1.bf16.msra.mxu0 %v366
    %425 = vmatprep.subr.bf16.mxu0 0
    %426 = vmatpush1.bf16.msra.mxu0 %v367
    %427 = vmatprep.subr.bf16.mxu0 0
    %428 = vmatpush1.bf16.msra.mxu0 %v368
    %429 = vmatprep.subr.bf16.mxu0 0
    %430 = vmatpush1.bf16.msra.mxu0 %v369
    %431 = vmatprep.subr.bf16.mxu0 0
    %432 = vmatpush1.bf16.msra.mxu0 %v370
    %433 = vmatprep.subr.bf16.mxu0 0
    %434 = vmatpush1.bf16.msra.mxu0 %v371
    %435 = vmatprep.subr.bf16.mxu0 0
    %436 = vmatpush1.bf16.msra.mxu0 %v372
    %437 = vmatprep.subr.bf16.mxu0 0
    %438 = vmatpush1.bf16.msra.mxu0 0
    %439 = vmatprep.subr.bf16.mxu0 0
    %440 = vmatpush1.bf16.msra.mxu0 0
    %441 = vmatprep.subr.bf16.mxu0 0
    %442 = vmatpush1.bf16.msra.mxu0 0
    %443 = vmatprep.subr.bf16.mxu0 0
    %444 = vmatpush1.bf16.msra.mxu0 0
    %445 = vmatprep.subr.bf16.mxu0 0
    %446 = vmatpush1.bf16.msra.mxu0 0
    %447 = vmatprep.subr.bf16.mxu0 0
    %448 = vmatpush1.bf16.msra.mxu0 0
    %449 = vmatprep.subr.bf16.mxu0 0
    %450 = vmatpush1.bf16.msra.mxu0 0
    %451 = vmatprep.subr.bf16.mxu0 0
    %452 = vmatpush1.bf16.msra.mxu0 0
    %453 = vmatprep.mubr.bf16.mxu0 0
    %454 = vmatmul.mubr.bf16.gmra.mrb[0].mxu0 %v405
    %v455 = vpop.f32.mrb[0].mxu0
    %v456 = vadd.f32 0.0, %v455
    %v457 = vpop.f32.mrb[0].mxu0
    %v458 = vpop.f32.mrb[0].mxu0
    %v459 = vadd.f32 0.0, %v458
    %v460 = vpop.f32.mrb[0].mxu0
    %461 = vmatprep.mubr.bf16.mxu0 0
    %462 = vmatmul.mubr.bf16.gmra.mrb[0].mxu0 %v406
    %v463 = vpop.f32.mrb[0].mxu0
    %v464 = vadd.f32 0.0, %v463
    %v465 = vpop.f32.mrb[0].mxu0
    %v466 = vpop.f32.mrb[0].mxu0
    %v467 = vadd.f32 0.0, %v466
    %v468 = vpop.f32.mrb[0].mxu0
    %469 = vmatprep.mubr.bf16.mxu0 0
    %470 = vmatmul.mubr.bf16.gmra.mrb[0].mxu0 %v407
    %v471 = vpop.f32.mrb[0].mxu0
    %v472 = vadd.f32 0.0, %v471
    %v473 = vpop.f32.mrb[0].mxu0
    %v474 = vpop.f32.mrb[0].mxu0
    %v475 = vadd.f32 0.0, %v474
    %v476 = vpop.f32.mrb[0].mxu0
    %477 = vmatprep.mubr.bf16.mxu0 0
    %478 = vmatmul.mubr.bf16.gmra.mrb[0].mxu0 %v408
    %v479 = vpop.f32.mrb[0].mxu0
    %v480 = vadd.f32 0.0, %v479
    %v481 = vpop.f32.mrb[0].mxu0
    %v482 = vpop.f32.mrb[0].mxu0
    %v483 = vadd.f32 0.0, %v482
    %v484 = vpop.f32.mrb[0].mxu0
    %485 = vmatprep.mubr.bf16.mxu0 0
    %486 = vmatmul.mubr.bf16.gmra.mrb[0].mxu0 %v409
    %v487 = vpop.f32.mrb[0].mxu0
    %v488 = vadd.f32 0.0, %v487
    %v489 = vpop.f32.mrb[0].mxu0
    %v490 = vpop.f32.mrb[0].mxu0
    %v491 = vadd.f32 0.0, %v490
    %v492 = vpop.f32.mrb[0].mxu0
    %493 = vmatprep.mubr.bf16.mxu0 0
    %494 = vmatmul.mubr.bf16.gmra.mrb[0].mxu0 %v410
    %v495 = vpop.f32.mrb[0].mxu0
    %v496 = vadd.f32 0.0, %v495
    %v497 = vpop.f32.mrb[0].mxu0
    %v498 = vpop.f32.mrb[0].mxu0
    %v499 = vadd.f32 0.0, %v498
    %v500 = vpop.f32.mrb[0].mxu0
    %501 = vmatprep.mubr.bf16.mxu0 0
    %502 = vmatmul.mubr.bf16.gmra.mrb[0].mxu0 %v411
    %v503 = vpop.f32.mrb[0].mxu0
    %v504 = vadd.f32 0.0, %v503
    %v505 = vpop.f32.mrb[0].mxu0
    %v506 = vpop.f32.mrb[0].mxu0
    %v507 = vadd.f32 0.0, %v506
    %v508 = vpop.f32.mrb[0].mxu0
    %509 = vmatprep.mubr.bf16.mxu0 0
    %510 = vmatmul.mubr.bf16.gmra.mrb[0].mxu0 %v412
    %v511 = vpop.f32.mrb[0].mxu0
    %v512 = vadd.f32 0.0, %v511
    %v513 = vpop.f32.mrb[0].mxu0
    %v514 = vpop.f32.mrb[0].mxu0
    %v515 = vadd.f32 0.0, %v514
    %v516 = vpop.f32.mrb[0].mxu0
    %517 = vdwg.mxu0
    %v518 = vadd.f32 %v333, %v456
    %v519 = vadd.f32 %v334, %v459
    %v520 = vadd.f32 %v335, %v464
    %v521 = vadd.f32 %v336, %v467
    %v522 = vadd.f32 %v337, %v472
    %v523 = vadd.f32 %v338, %v475
    %v524 = vadd.f32 %v339, %v480
    %v525 = vadd.f32 %v340, %v483
    %v526 = vadd.f32 %v341, %v488
    %v527 = vadd.f32 %v342, %v491
    %v528 = vadd.f32 %v343, %v496
    %v529 = vadd.f32 %v344, %v499
    %v530 = vadd.f32 %v345, %v504
    %v531 = vadd.f32 %v346, %v507
    %v532 = vadd.f32 %v347, %v512
    %v533 = vadd.f32 %v348, %v515
    %534 = vst [vmem:[#allocation2] sm:$0xff] %v518
    %535 = vst [vmem:[#allocation2 + $0x8] sm:$0xff] %v519
    %536 = vst [vmem:[#allocation2 + $0x10] sm:$0xff] %v520
    %537 = vst [vmem:[#allocation2 + $0x18] sm:$0xff] %v521
    %538 = vst [vmem:[#allocation2 + $0x20] sm:$0xff] %v522
    %539 = vst [vmem:[#allocation2 + $0x28] sm:$0xff] %v523
    %540 = vst [vmem:[#allocation2 + $0x30] sm:$0xff] %v524
    %541 = vst [vmem:[#allocation2 + $0x38] sm:$0xff] %v525
    %542 = vst [vmem:[#allocation2 + $0x40] sm:$0xff] %v526
    %543 = vst [vmem:[#allocation2 + $0x48] sm:$0xff] %v527
    %544 = vst [vmem:[#allocation2 + $0x50] sm:$0xff] %v528
    %545 = vst [vmem:[#allocation2 + $0x58] sm:$0xff] %v529
    %546 = vst [vmem:[#allocation2 + $0x60] sm:$0xff] %v530
    %547 = vst [vmem:[#allocation2 + $0x68] sm:$0xff] %v531
    %548 = vst [vmem:[#allocation2 + $0x70] sm:$0xff] %v532
    %549 = vst [vmem:[#allocation2 + $0x78] sm:$0xff] %v533
    // Predicated region
    $region22: #{tpu_custom_call.1} parent=1 // pred_check
      %p550 = pneg %p41
    $region23: #{tpu_custom_call.1} parent=1 // pred_check_branch
      %552 = sbr.rel (%p550) target = $region25
    $region24: #{tpu_custom_call.1} parent=1 // pred_region
      %v553 = vld [vmem:[#allocation2] sm:$0xff]
      %v554 = vld [vmem:[#allocation2 + $0x8] sm:$0xff]
      %v555 = vld [vmem:[#allocation2 + $0x10] sm:$0xff]
      %v556 = vld [vmem:[#allocation2 + $0x18] sm:$0xff]
      %v557 = vld [vmem:[#allocation2 + $0x20] sm:$0xff]
      %v558 = vld [vmem:[#allocation2 + $0x28] sm:$0xff]
      %v559 = vld [vmem:[#allocation2 + $0x30] sm:$0xff]
      %v560 = vld [vmem:[#allocation2 + $0x38] sm:$0xff]
      %v561 = vld [vmem:[#allocation2 + $0x40] sm:$0xff]
      %v562 = vld [vmem:[#allocation2 + $0x48] sm:$0xff]
      %v563 = vld [vmem:[#allocation2 + $0x50] sm:$0xff]
      %v564 = vld [vmem:[#allocation2 + $0x58] sm:$0xff]
      %v565 = vld [vmem:[#allocation2 + $0x60] sm:$0xff]
      %v566 = vld [vmem:[#allocation2 + $0x68] sm:$0xff]
      %v567 = vld [vmem:[#allocation2 + $0x70] sm:$0xff]
      %v568 = vld [vmem:[#allocation2 + $0x78] sm:$0xff]
      %v569 = vmul.f32 %v553, %v553
      %v570 = vmul.f32 %v554, %v554
      %v571 = vmul.f32 %v555, %v555
      %v572 = vmul.f32 %v556, %v556
      %v573 = vmul.f32 %v557, %v557
      %v574 = vmul.f32 %v558, %v558
      %v575 = vmul.f32 %v559, %v559
      %v576 = vmul.f32 %v560, %v560
      %v577 = vmul.f32 %v561, %v561
      %v578 = vmul.f32 %v562, %v562
      %v579 = vmul.f32 %v563, %v563
      %v580 = vmul.f32 %v564, %v564
      %v581 = vmul.f32 %v565, %v565
      %v582 = vmul.f32 %v566, %v566
      %v583 = vmul.f32 %v567, %v567
      %v584 = vmul.f32 %v568, %v568
      %585 = vadd.xlane.f32.xlu0 %v569
      %v586 = vpop.xlane.xlu0 %585
      %587 = vadd.xlane.f32.xlu0 %v570
      %v588 = vpop.xlane.xlu0 %587
      %589 = vadd.xlane.f32.xlu0 %v571
      %v590 = vpop.xlane.xlu0 %589
      %591 = vadd.xlane.f32.xlu0 %v572
      %v592 = vpop.xlane.xlu0 %591
      %593 = vadd.xlane.f32.xlu0 %v573
      %v594 = vpop.xlane.xlu0 %593
      %595 = vadd.xlane.f32.xlu0 %v574
      %v596 = vpop.xlane.xlu0 %595
      %597 = vadd.xlane.f32.xlu0 %v575
      %v598 = vpop.xlane.xlu0 %597
      %599 = vadd.xlane.f32.xlu0 %v576
      %v600 = vpop.xlane.xlu0 %599
      %601 = vadd.xlane.f32.xlu0 %v577
      %v602 = vpop.xlane.xlu0 %601
      %603 = vadd.xlane.f32.xlu0 %v578
      %v604 = vpop.xlane.xlu0 %603
      %605 = vadd.xlane.f32.xlu0 %v579
      %v606 = vpop.xlane.xlu0 %605
      %607 = vadd.xlane.f32.xlu0 %v580
      %v608 = vpop.xlane.xlu0 %607
      %609 = vadd.xlane.f32.xlu0 %v581
      %v610 = vpop.xlane.xlu0 %609
      %611 = vadd.xlane.f32.xlu0 %v582
      %v612 = vpop.xlane.xlu0 %611
      %613 = vadd.xlane.f32.xlu0 %v583
      %v614 = vpop.xlane.xlu0 %613
      %615 = vadd.xlane.f32.xlu0 %v584
      %v616 = vpop.xlane.xlu0 %615
      %v617 = vmax.f32 %v586, 1e-30
      %v618 = vmax.f32 %v588, 1e-30
      %v619 = vmax.f32 %v590, 1e-30
      %v620 = vmax.f32 %v592, 1e-30
      %v621 = vmax.f32 %v594, 1e-30
      %v622 = vmax.f32 %v596, 1e-30
      %v623 = vmax.f32 %v598, 1e-30
      %v624 = vmax.f32 %v600, 1e-30
      %v625 = vmax.f32 %v602, 1e-30
      %v626 = vmax.f32 %v604, 1e-30
      %v627 = vmax.f32 %v606, 1e-30
      %v628 = vmax.f32 %v608, 1e-30
      %v629 = vmax.f32 %v610, 1e-30
      %v630 = vmax.f32 %v612, 1e-30
      %v631 = vmax.f32 %v614, 1e-30
      %v632 = vmax.f32 %v616, 1e-30
      %v633 = vrsqrt.pop %v617
      %v634 = vrsqrt.pop %v618
      %v635 = vrsqrt.pop %v619
      %v636 = vrsqrt.pop %v620
      %v637 = vrsqrt.pop %v621
      %v638 = vrsqrt.pop %v622
      %v639 = vrsqrt.pop %v623
      %v640 = vrsqrt.pop %v624
      %v641 = vrsqrt.pop %v625
      %v642 = vrsqrt.pop %v626
      %v643 = vrsqrt.pop %v627
      %v644 = vrsqrt.pop %v628
      %v645 = vrsqrt.pop %v629
      %v646 = vrsqrt.pop %v630
      %v647 = vrsqrt.pop %v631
      %v648 = vrsqrt.pop %v632
      %v649 = vmul.f32 %v617, %v633
      %v650 = vmul.f32 %v618, %v634
      %v651 = vmul.f32 %v619, %v635
      %v652 = vmul.f32 %v620, %v636
      %v653 = vmul.f32 %v621, %v637
      %v654 = vmul.f32 %v622, %v638
      %v655 = vmul.f32 %v623, %v639
      %v656 = vmul.f32 %v624, %v640
      %v657 = vmul.f32 %v625, %v641
      %v658 = vmul.f32 %v626, %v642
      %v659 = vmul.f32 %v627, %v643
      %v660 = vmul.f32 %v628, %v644
      %v661 = vmul.f32 %v629, %v645
      %v662 = vmul.f32 %v630, %v646
      %v663 = vmul.f32 %v631, %v647
      %v664 = vmul.f32 %v632, %v648
      %v665 = vtanh.pop %v649
      %v666 = vtanh.pop %v650
      %v667 = vtanh.pop %v651
      %v668 = vtanh.pop %v652
      %v669 = vtanh.pop %v653
      %v670 = vtanh.pop %v654
      %v671 = vtanh.pop %v655
      %v672 = vtanh.pop %v656
      %v673 = vtanh.pop %v657
      %v674 = vtanh.pop %v658
      %v675 = vtanh.pop %v659
      %v676 = vtanh.pop %v660
      %v677 = vtanh.pop %v661
      %v678 = vtanh.pop %v662
      %v679 = vtanh.pop %v663
      %v680 = vtanh.pop %v664
      %v681 = vmul.f32 %v665, %v633
      %v682 = vmul.f32 %v666, %v634
      %v683 = vmul.f32 %v667, %v635
      %v684 = vmul.f32 %v668, %v636
      %v685 = vmul.f32 %v669, %v637
      %v686 = vmul.f32 %v670, %v638
      %v687 = vmul.f32 %v671, %v639
      %v688 = vmul.f32 %v672, %v640
      %v689 = vmul.f32 %v673, %v641
      %v690 = vmul.f32 %v674, %v642
      %v691 = vmul.f32 %v675, %v643
      %v692 = vmul.f32 %v676, %v644
      %v693 = vmul.f32 %v677, %v645
      %v694 = vmul.f32 %v678, %v646
      %v695 = vmul.f32 %v679, %v647
      %v696 = vmul.f32 %v680, %v648
      %vm697 = vcmp.gt.f32.partialorder %v665, 0.996
      %vm698 = vcmp.gt.f32.partialorder %v666, 0.996
      %vm699 = vcmp.gt.f32.partialorder %v667, 0.996
      %vm700 = vcmp.gt.f32.partialorder %v668, 0.996
      %vm701 = vcmp.gt.f32.partialorder %v669, 0.996
      %vm702 = vcmp.gt.f32.partialorder %v670, 0.996
      %vm703 = vcmp.gt.f32.partialorder %v671, 0.996
      %vm704 = vcmp.gt.f32.partialorder %v672, 0.996
      %vm705 = vcmp.gt.f32.partialorder %v673, 0.996
      %vm706 = vcmp.gt.f32.partialorder %v674, 0.996
      %vm707 = vcmp.gt.f32.partialorder %v675, 0.996
      %vm708 = vcmp.gt.f32.partialorder %v676, 0.996
      %vm709 = vcmp.gt.f32.partialorder %v677, 0.996
      %vm710 = vcmp.gt.f32.partialorder %v678, 0.996
      %vm711 = vcmp.gt.f32.partialorder %v679, 0.996
      %vm712 = vcmp.gt.f32.partialorder %v680, 0.996
      %v713 = vrcp.pop %v665
      %v714 = vmul.f32 0.996, %v713
      %v715 = vrcp.pop %v666
      %v716 = vmul.f32 0.996, %v715
      %v717 = vrcp.pop %v667
      %v718 = vmul.f32 0.996, %v717
      %v719 = vrcp.pop %v668
      %v720 = vmul.f32 0.996, %v719
      %v721 = vrcp.pop %v669
      %v722 = vmul.f32 0.996, %v721
      %v723 = vrcp.pop %v670
      %v724 = vmul.f32 0.996, %v723
      %v725 = vrcp.pop %v671
      %v726 = vmul.f32 0.996, %v725
      %v727 = vrcp.pop %v672
      %v728 = vmul.f32 0.996, %v727
      %v729 = vrcp.pop %v673
      %v730 = vmul.f32 0.996, %v729
      %v731 = vrcp.pop %v674
      %v732 = vmul.f32 0.996, %v731
      %v733 = vrcp.pop %v675
      %v734 = vmul.f32 0.996, %v733
      %v735 = vrcp.pop %v676
      %v736 = vmul.f32 0.996, %v735
      %v737 = vrcp.pop %v677
      %v738 = vmul.f32 0.996, %v737
      %v739 = vrcp.pop %v678
      %v740 = vmul.f32 0.996, %v739
      %v741 = vrcp.pop %v679
      %v742 = vmul.f32 0.996, %v741
      %v743 = vrcp.pop %v680
      %v744 = vmul.f32 0.996, %v743
      %v745 = vsel %vm697, %v714, 1.0
      %v746 = vsel %vm698, %v716, 1.0
      %v747 = vsel %vm699, %v718, 1.0
      %v748 = vsel %vm700, %v720, 1.0
      %v749 = vsel %vm701, %v722, 1.0
      %v750 = vsel %vm702, %v724, 1.0
      %v751 = vsel %vm703, %v726, 1.0
      %v752 = vsel %vm704, %v728, 1.0
      %v753 = vsel %vm705, %v730, 1.0
      %v754 = vsel %vm706, %v732, 1.0
      %v755 = vsel %vm707, %v734, 1.0
      %v756 = vsel %vm708, %v736, 1.0
      %v757 = vsel %vm709, %v738, 1.0
      %v758 = vsel %vm710, %v740, 1.0
      %v759 = vsel %vm711, %v742, 1.0
      %v760 = vsel %vm712, %v744, 1.0
      %v761 = vmul.f32 %v681, %v745
      %v762 = vmul.f32 %v682, %v746
      %v763 = vmul.f32 %v683, %v747
      %v764 = vmul.f32 %v684, %v748
      %v765 = vmul.f32 %v685, %v749
      %v766 = vmul.f32 %v686, %v750
      %v767 = vmul.f32 %v687, %v751
      %v768 = vmul.f32 %v688, %v752
      %v769 = vmul.f32 %v689, %v753
      %v770 = vmul.f32 %v690, %v754
      %v771 = vmul.f32 %v691, %v755
      %v772 = vmul.f32 %v692, %v756
      %v773 = vmul.f32 %v693, %v757
      %v774 = vmul.f32 %v694, %v758
      %v775 = vmul.f32 %v695, %v759
      %v776 = vmul.f32 %v696, %v760
      %v777 = vmul.f32 %v761, %v553
      %v778 = vmul.f32 %v762, %v554
      %v779 = vmul.f32 %v763, %v555
      %v780 = vmul.f32 %v764, %v556
      %v781 = vmul.f32 %v765, %v557
      %v782 = vmul.f32 %v766, %v558
      %v783 = vmul.f32 %v767, %v559
      %v784 = vmul.f32 %v768, %v560
      %v785 = vmul.f32 %v769, %v561
      %v786 = vmul.f32 %v770, %v562
      %v787 = vmul.f32 %v771, %v563
      %v788 = vmul.f32 %v772, %v564
      %v789 = vmul.f32 %v773, %v565
      %v790 = vmul.f32 %v774, %v566
      %v791 = vmul.f32 %v775, %v567
      %v792 = vmul.f32 %v776, %v568
      %793 = vst [vmem:[#allocation8] sm:$0xff] %v777
      %794 = vst [vmem:[#allocation8 + $0x8] sm:$0xff] %v778
      %795 = vst [vmem:[#allocation8 + $0x10] sm:$0xff] %v779
      %796 = vst [vmem:[#allocation8 + $0x18] sm:$0xff] %v780
      %797 = vst [vmem:[#allocation8 + $0x20] sm:$0xff] %v781
      %798 = vst [vmem:[#allocation8 + $0x28] sm:$0xff] %v782
      %799 = vst [vmem:[#allocation8 + $0x30] sm:$0xff] %v783
      %800 = vst [vmem:[#allocation8 + $0x38] sm:$0xff] %v784
      %801 = vst [vmem:[#allocation8 + $0x40] sm:$0xff] %v785
      %802 = vst [vmem:[#allocation8 + $0x48] sm:$0xff] %v786
      %803 = vst [vmem:[#allocation8 + $0x50] sm:$0xff] %v787
      %804 = vst [vmem:[#allocation8 + $0x58] sm:$0xff] %v788
      %805 = vst [vmem:[#allocation8 + $0x60] sm:$0xff] %v789
      %806 = vst [vmem:[#allocation8 + $0x68] sm:$0xff] %v790
      %807 = vst [vmem:[#allocation8 + $0x70] sm:$0xff] %v791
      %808 = vst [vmem:[#allocation8 + $0x78] sm:$0xff] %v792
    $region25: #{tpu_custom_call.1} parent=1 // pred_fallthru
      _
    // Predicated region
    $region26: #{tpu_custom_call.1} parent=1 // pred_check
      _
    $region27: #{tpu_custom_call.1} parent=1 // pred_check_branch
      %810 = sbr.rel (0) target = $region29
    $region28: #{tpu_custom_call.1} parent=1 // pred_region
      %s812 = ssub.s32 2048, 2048
      %813 = vsyncadd [#allocation5], %s812
      %s814 = sshll.u32 [#allocation8], 4
      %s815 = int_to_ptr.vmem [resolvable:$true] %s814
      %820 = dma.vmem_to_hbm [thread:$0]  %s815, 2048, %s2, [#allocation5], 128, 128, 8
    $region29: #{tpu_custom_call.1} parent=1 // pred_fallthru
      _
    // Predicated region
    $region30: #{tpu_custom_call.1} parent=1 // pred_check
      _
    $region31: #{tpu_custom_call.1} parent=1 // pred_check_branch
      %822 = sbr.rel (0) target = $region33
    $region32: #{tpu_custom_call.1} parent=1 // pred_region
      %823 = dma.done [#allocation5], 2048
    $region33: #{tpu_custom_call.1} parent=1 // pred_fallthru
      _
    %824 = vsyncpa [#allocation4], 1
    %825 = vsyncpa [#allocation7], 1
    %826 = vsyncpa [#allocation5], 1

</llo_original>
